<compile_context>
chip_gen: v7x
topology: tpu7x:2x2x1
jax: 0.10.0
libtpu: 0.0.40
codegen_flags: <defaults>
</compile_context>

<pallas_src>
import jax
import jax.numpy as jnp
from jax.experimental import pallas as pl
from jax.experimental.pallas import tpu as pltpu


# ---------------------------------------------------------------------------
# Pallas kernel: fused one-hot MXU gather + split matmul + ReLU
# ---------------------------------------------------------------------------
def _a2b_kernel(src_ref, edge_ref, atom_proj_ref, w_edge_ref, o_ref):
    # src_ref:       (tE, 1)  int32    source-node index per edge row
    # edge_ref:      (tE, De)           edge features (caller dtype)
    # atom_proj_ref: (N,  Do) compute   pre-projected node table (atom @ W_node + b)
    # w_edge_ref:    (De, Do) compute   edge half of the Linear weight
    # o_ref:         (tE, Do)           output tile
    t_e = src_ref.shape[0]
    n_nodes = atom_proj_ref.shape[0]
    cdt = atom_proj_ref.dtype  # MXU compute dtype (bf16 or f32)

    # One-hot gather of the (bias-folded) pre-projected node table on the MXU.
    node_ids = jax.lax.broadcasted_iota(jnp.int32, (t_e, n_nodes), 1)
    onehot = (src_ref[...] == node_ids).astype(cdt)                       # (tE, N)
    y = jnp.dot(onehot, atom_proj_ref[...],
                preferred_element_type=jnp.float32)                       # (tE, Do)

    # Edge half of the concat'd Linear.
    y = y + jnp.dot(edge_ref[...].astype(cdt), w_edge_ref[...],
                    preferred_element_type=jnp.float32)

    # ReLU; store in output dtype.  OOB rows of a ragged last tile are masked by Pallas.
    o_ref[...] = jnp.maximum(y, 0.0).astype(o_ref.dtype)


# ---------------------------------------------------------------------------
# Wrapper
# ---------------------------------------------------------------------------
def _round_up(x, m):
    return ((x + m - 1) // m) * m


def _vmem_capacity_bytes():
    try:
        info = pltpu.get_tpu_info()
        cap = getattr(info, "vmem_capacity_bytes", None)
        if cap:
            return int(cap)
    except Exception:
        pass
    return 64 * 1024 * 1024   # conservative fallback (v7x physical VMEM)


def atom2bond_layer(atom_embedding, edge_embedding, src_idx, w_t, b,
                    *, compute_dtype=jnp.bfloat16, tile_edges=4096,
                    out_dtype=None):
    """Pallas implementation of Atom2BondLayer_1.forward.

    atom_embedding : [N, node_dim]
    edge_embedding : [E, edge_dim]
    src_idx        : [E] int source-node index per edge (the graph structure)
    w_t            : [node_dim + edge_dim, node_dim]  (PyTorch Linear weight, transposed)
    b              : [node_dim]
    returns        : [E, node_dim]
    """
    n_nodes, node_dim = atom_embedding.shape
    num_edges, edge_dim = edge_embedding.shape
    d_in, d_out = w_t.shape
    assert d_in == node_dim + edge_dim
    out_dtype = atom_embedding.dtype if out_dtype is None else out_dtype

    if num_edges == 0:                       # empty-graph guard (zero-length grid)
        return jnp.zeros((0, d_out), dtype=out_dtype)

    # Split the concat'd Linear: concat(src, edge) @ W == src @ W_node + edge @ W_edge.
    w_node = w_t[:node_dim]                  # (node_dim, d_out)
    w_edge = w_t[node_dim:]                  # (edge_dim, d_out)

    # Pre-project the (small) node table once; fold the bias in (each edge gathers
    # exactly one node row, so the bias is applied exactly once per edge).
    atom_proj = (jnp.dot(atom_embedding, w_node,
                         precision=jax.lax.Precision.HIGHEST)
                 + b.reshape(1, d_out))                                    # (N, d_out) f32
    atom_proj_c = atom_proj.astype(compute_dtype)
    w_edge_c = w_edge.astype(compute_dtype)
    src2 = src_idx.astype(jnp.int32).reshape(num_edges, 1)

    cbytes = jnp.dtype(compute_dtype).itemsize
    obytes = jnp.dtype(out_dtype).itemsize
    ebytes = jnp.dtype(edge_embedding.dtype).itemsize

    # --- edge-tile selection -------------------------------------------------
    if num_edges <= tile_edges:
        t_e = num_edges                               # single full block (always legal)
    elif num_edges <= 2 * tile_edges:
        t_e = _round_up((num_edges + 1) // 2, 8)      # >= 2 steps so both v7x TCs get work
    else:
        t_e = _round_up(tile_edges, 8)

    vmem_cap = _vmem_capacity_bytes()
    vmem_budget = int(0.70 * vmem_cap)

    def _step_bytes(te):
        onehot_tmp = te * n_nodes * (4 + cbytes)                    # i32 iota + one-hot
        tiles = 2 * te * (4 + edge_dim * ebytes + d_out * obytes)   # double-buffered I/O
        resident = 2 * (n_nodes + edge_dim) * d_out * cbytes        # table + W_edge (x2 safety)
        return onehot_tmp + tiles + resident

    # Shrink the tile if the (t_e, N) one-hot temporaries would blow VMEM
    # (v7x only has 64 MiB physical).  TODO(synk): switch to DMA row-gather instead.
    while t_e > 8 and _step_bytes(t_e) > vmem_budget:
        new_te = max(8, _round_up(t_e // 2, 8))
        if new_te >= t_e:
            break
        t_e = new_te

    vmem_limit = int(min(vmem_cap - (4 << 20),
                         max(32 << 20, 2 * _step_bytes(t_e))))

    grid_spec = pltpu.PrefetchScalarGridSpec(
        num_scalar_prefetch=0,
        grid=(pl.cdiv(num_edges, t_e),),
        in_specs=[
            pl.BlockSpec((t_e, 1), lambda i: (i, 0)),            # src indices
            pl.BlockSpec((t_e, edge_dim), lambda i: (i, 0)),     # edge features
            pl.BlockSpec((n_nodes, d_out), lambda i: (0, 0)),    # resident projected node table
            pl.BlockSpec((edge_dim, d_out), lambda i: (0, 0)),   # resident edge weight
        ],
        out_specs=pl.BlockSpec((t_e, d_out), lambda i: (i, 0)),
    )

    out = pl.pallas_call(
        _a2b_kernel,
        out_shape=jax.ShapeDtypeStruct((num_edges, d_out), out_dtype),
        grid_spec=grid_spec,
        compiler_params=pltpu.CompilerParams(
            dimension_semantics=("parallel",),
            vmem_limit_bytes=vmem_limit,
        ),
    )(src2, edge_embedding, atom_proj_c, w_edge_c)

    return out


# ---------------------------------------------------------------------------
# Pure-JAX reference (mirrors the PyTorch forward)
# ---------------------------------------------------------------------------
def atom2bond_ref(atom_embedding, edge_embedding, src_idx, w_t, b):
    x = jnp.concatenate(
        [jnp.take(atom_embedding, src_idx, axis=0), edge_embedding], axis=-1)
    y = jnp.dot(x, w_t, precision=jax.lax.Precision.HIGHEST) + b
    return jnp.maximum(y, 0.0)


if __name__ == "__main__":
    node_dim = 32
    edge_dim = 32
    num_nodes = 8
    num_edges = 16

    key = jax.random.PRNGKey(0)
    k_atom, k_edge, k_src, k_w, k_b = jax.random.split(key, 5)

    atom_embedding = jax.random.normal(k_atom, (num_nodes, node_dim), dtype=jnp.float32)
    edge_embedding = jax.random.normal(k_edge, (num_edges, edge_dim), dtype=jnp.float32)
    src_idx = jax.random.randint(k_src, (num_edges,), 0, num_nodes, dtype=jnp.int32)

    # Deterministic parameter init (nn.Linear(node_dim+edge_dim, node_dim) shapes).
    in_dim = node_dim + edge_dim
    bound = 1.0 / (in_dim ** 0.5)
    w = jax.random.uniform(k_w, (node_dim, in_dim), minval=-bound, maxval=bound,
                           dtype=jnp.float32)          # PyTorch stores (out, in)
    b = jax.random.uniform(k_b, (node_dim,), minval=-bound, maxval=bound,
                           dtype=jnp.float32)
    w_t = w.T                                           # (in_dim, out_dim) for x @ W_t

    ref = atom2bond_ref(atom_embedding, edge_embedding, src_idx, w_t, b)

    # Strict check with f32 MXU operands (single full tile).
    out_f32 = jax.block_until_ready(
        atom2bond_layer(atom_embedding, edge_embedding, src_idx, w_t, b,
                        compute_dtype=jnp.float32))
    assert out_f32.shape == (num_edges, node_dim)
    assert jnp.allclose(out_f32, ref, atol=1e-4, rtol=1e-4), \
        "Pallas (f32 compute) mismatch vs reference"

    # Fast path: bf16 MXU operands, f32 accumulate (default).
    out_bf16 = jax.block_until_ready(
        atom2bond_layer(atom_embedding, edge_embedding, src_idx, w_t, b))
    assert out_bf16.shape == (num_edges, node_dim)
    assert jnp.allclose(out_bf16, ref, atol=5e-2, rtol=5e-2), \
        "Pallas (bf16 compute) mismatch vs reference"

    # Multi-tile path with a ragged (masked) last tile: E=19 edges, tile of 8
    # -> grid of 3, last tile writes only 3 valid rows (no wrapper pad / slice).
    e2 = 19
    k_e2, k_s2 = jax.random.split(jax.random.PRNGKey(1), 2)
    edge2 = jax.random.normal(k_e2, (e2, edge_dim), dtype=jnp.float32)
    src2 = jax.random.randint(k_s2, (e2,), 0, num_nodes, dtype=jnp.int32)
    ref2 = atom2bond_ref(atom_embedding, edge2, src2, w_t, b)
    out2 = jax.block_until_ready(
        atom2bond_layer(atom_embedding, edge2, src2, w_t, b,
                        compute_dtype=jnp.float32, tile_edges=8))
    assert out2.shape == (e2, node_dim)
    assert jnp.allclose(out2, ref2, atol=1e-4, rtol=1e-4), \
        "Pallas (ragged last tile) mismatch vs reference"

    print("KERNEL_OK")
</pallas_src>

<mosaic_0001>
module attributes {stable_mosaic.version = 11 : i64} {
  func.func @_a2b_kernel(%arg0: i32, %arg1: memref<16x1xi32, #tpu.memory_space<vmem>>, %arg2: memref<16x32xf32, #tpu.memory_space<vmem>>, %arg3: memref<8x32xf32, #tpu.memory_space<vmem>>, %arg4: memref<32x32xf32, #tpu.memory_space<vmem>>, %arg5: memref<16x32xf32, #tpu.memory_space<vmem>>) attributes {dimension_semantics = [#tpu.dimension_semantics<parallel>], iteration_bounds = array<i64: 1>, scalar_prefetch = 0 : i64, scratch_operands = 0 : i64, tpu.core_type = #tpu.core_type<tc>, window_params = [{transform_indices = @transform_0, window_bounds = array<i64: 16, 1>}, {transform_indices = @transform_1, window_bounds = array<i64: 16, 32>}, {pipeline_mode = #tpu.pipeline_mode<synchronous>, transform_indices = @transform_2, window_bounds = array<i64: 8, 32>}, {pipeline_mode = #tpu.pipeline_mode<synchronous>, transform_indices = @transform_3, window_bounds = array<i64: 32, 32>}, {transform_indices = @transform_4, window_bounds = array<i64: 16, 32>}]} {
    %0 = tpu.iota {dimensions = array<i32: 1>} : vector<16x8xi32>
    %c0 = arith.constant 0 : index
    %c0_0 = arith.constant 0 : index
    %1 = vector.load %arg1[%c0, %c0_0] : memref<16x1xi32, #tpu.memory_space<vmem>>, vector<16x1xi32>
    %2 = vector.broadcast %1 : vector<16x1xi32> to vector<16x8xi32>
    %3 = arith.cmpi eq, %2, %0 : vector<16x8xi32>
    %4 = arith.extui %3 : vector<16x8xi1> to vector<16x8xi32>
    %5 = arith.sitofp %4 : vector<16x8xi32> to vector<16x8xf32>
    %c0_1 = arith.constant 0 : index
    %c0_2 = arith.constant 0 : index
    %6 = vector.load %arg3[%c0_1, %c0_2] : memref<8x32xf32, #tpu.memory_space<vmem>>, vector<8x32xf32>
    %cst = arith.constant dense<0.000000e+00> : vector<16x32xf32>
    %7 = tpu.matmul %5, %6, %cst {dimension_numbers = #tpu.dot_dimension_numbers<[1], [0], [0], [1], [0, 0, 1, 1], [], []>} : vector<16x8xf32>, vector<8x32xf32>, vector<16x32xf32> -> vector<16x32xf32>
    %c0_3 = arith.constant 0 : index
    %c0_4 = arith.constant 0 : index
    %8 = vector.load %arg2[%c0_3, %c0_4] : memref<16x32xf32, #tpu.memory_space<vmem>>, vector<16x32xf32>
    %c0_5 = arith.constant 0 : index
    %c0_6 = arith.constant 0 : index
    %9 = vector.load %arg4[%c0_5, %c0_6] : memref<32x32xf32, #tpu.memory_space<vmem>>, vector<32x32xf32>
    %cst_7 = arith.constant dense<0.000000e+00> : vector<16x32xf32>
    %10 = tpu.matmul %8, %9, %cst_7 {dimension_numbers = #tpu.dot_dimension_numbers<[1], [0], [0], [1], [0, 0, 1, 1], [], []>} : vector<16x32xf32>, vector<32x32xf32>, vector<16x32xf32> -> vector<16x32xf32>
    %11 = arith.addf %7, %10 : vector<16x32xf32>
    %cst_8 = arith.constant 0.000000e+00 : f32
    %12 = vector.broadcast %cst_8 : f32 to vector<16x32xf32>
    %13 = arith.maximumf %11, %12 : vector<16x32xf32>
    %c0_9 = arith.constant 0 : index
    %c0_10 = arith.constant 0 : index
    %14 = vector.load %arg5[%c0_9, %c0_10] : memref<16x32xf32, #tpu.memory_space<vmem>>, vector<16x32xf32>
    tpu.vector_store %arg5[%c0_9, %c0_10], %13 {strides = array<i32>} : memref<16x32xf32, #tpu.memory_space<vmem>>, vector<16x32xf32>,
    return
  }
  func.func @transform_0(%arg0: i32) -> (i32, i32) {
    %c0_i32 = arith.constant 0 : i32
    %c0_i32_0 = arith.constant 0 : i32
    return %arg0, %c0_i32 : i32, i32
  }
  func.func @transform_1(%arg0: i32) -> (i32, i32) {
    %c0_i32 = arith.constant 0 : i32
    %c0_i32_0 = arith.constant 0 : i32
    return %arg0, %c0_i32 : i32, i32
  }
  func.func @transform_2(%arg0: i32) -> (i32, i32) {
    %c0_i32 = arith.constant 0 : i32
    %c0_i32_0 = arith.constant 0 : i32
    %c0_i32_1 = arith.constant 0 : i32
    return %c0_i32, %c0_i32_0 : i32, i32
  }
  func.func @transform_3(%arg0: i32) -> (i32, i32) {
    %c0_i32 = arith.constant 0 : i32
    %c0_i32_0 = arith.constant 0 : i32
    %c0_i32_1 = arith.constant 0 : i32
    return %c0_i32, %c0_i32_0 : i32, i32
  }
  func.func @transform_4(%arg0: i32) -> (i32, i32) {
    %c0_i32 = arith.constant 0 : i32
    %c0_i32_0 = arith.constant 0 : i32
    return %arg0, %c0_i32 : i32, i32
  }
}

</mosaic_0001>

<llo_original>
// kernel: tpu_custom_call.1
$region0: #{tpu_custom_call.1}
  #allocation0 [shape = 'u32[]', space=smem, size = 0x4, offset = 0x4, fixed_abs, tag = 'smem constant byte address 0x4 - core index']
  #allocation1 [shape = 'u32[144,128]{1,0:T(1,128)}', space=vmem, size = 0x12000, scoped, tag = 'internal scratch']
  %s0 = inlined_call_operand.vmem [shape: s32[16,1], index: 0, kind: input, shape index: {}]
  %s1 = inlined_call_operand.vmem [shape: f32[16,32], index: 1, kind: input, shape index: {}]
  %s2 = inlined_call_operand.vmem [shape: f32[8,32], index: 2, kind: input, shape index: {}]
  %s3 = inlined_call_operand.hbm [shape: f32[32,32], index: 3, kind: input, shape index: {}]
  %s4 = inlined_call_operand.hbm [shape: f32[16,32], index: 4, kind: output, shape index: {}]
  %s5 = sld [smem:[#allocation0]]
  $region30: #{tpu_custom_call.1} parent=0
    _
  %s7 = ssub.s32 1, %s5
  %s8 = scalar_select 0, %s7, %s5
  $region1: #{tpu_custom_call.1} parent=0
    #allocation2 [shape = 'u8[16384]{0}', space=vmem, size = 0x4000, scoped, tag = 'input window, operand 3, single buffered']
    #allocation3 [shape = 's32[1]{0}', space=sflag, size = 0x4, scoped, tag = 'scoped memory for tpu_custom_call.1']
    #allocation4 [shape = 's32[1]{0}', space=sflag, size = 0x4, scoped, tag = 'scoped memory for tpu_custom_call.1']
    #allocation5 [shape = 'u8[8192]{0}', space=vmem, size = 0x2000, scoped, tag = 'output window, operand 0, single buffered']
    %9 = vsyncpa [#allocation3], 0
    %10 = vsyncpa [#allocation4], 0
    // Predicated region
    $region2: #{tpu_custom_call.1} parent=1 // pred_check
      _
    $region3: #{tpu_custom_call.1} parent=1 // pred_check_branch
      %12 = sbr.rel (0) target = $region5
    $region4: #{tpu_custom_call.1} parent=1 // pred_region
      _
    $region5: #{tpu_custom_call.1} parent=1 // pred_fallthru
      _
    // Predicated region
    $region6: #{tpu_custom_call.1} parent=1 // pred_check
      _
    $region7: #{tpu_custom_call.1} parent=1 // pred_check_branch
      %14 = sbr.rel (0) target = $region9
    $region8: #{tpu_custom_call.1} parent=1 // pred_region
      _
    $region9: #{tpu_custom_call.1} parent=1 // pred_fallthru
      _
    // Predicated region
    $region10: #{tpu_custom_call.1} parent=1 // pred_check
      _
    $region11: #{tpu_custom_call.1} parent=1 // pred_check_branch
      %16 = sbr.rel (0) target = $region13
    $region12: #{tpu_custom_call.1} parent=1 // pred_region
      _
    $region13: #{tpu_custom_call.1} parent=1 // pred_fallthru
      _
    // Predicated region
    $region14: #{tpu_custom_call.1} parent=1 // pred_check
      _
    $region15: #{tpu_custom_call.1} parent=1 // pred_check_branch
      %18 = sbr.rel (0) target = $region17
    $region16: #{tpu_custom_call.1} parent=1 // pred_region
      %s20 = ssub.s32 512, 512
      %21 = vsyncadd [#allocation3], %s20
      %s22 = sshll.u32 [#allocation2], 4
      %s23 = int_to_ptr.vmem [resolvable:$true] %s22
      %28 = dma.hbm_to_vmem [thread:$0]  %s3, 512, %s23, [#allocation3], 128, 128, 8
    $region17: #{tpu_custom_call.1} parent=1 // pred_fallthru
      _
    // Predicated region
    $region18: #{tpu_custom_call.1} parent=1 // pred_check
      _
    $region19: #{tpu_custom_call.1} parent=1 // pred_check_branch
      %30 = sbr.rel (0) target = $region21
    $region20: #{tpu_custom_call.1} parent=1 // pred_region
      %31 = dma.done [#allocation3], 512
    $region21: #{tpu_custom_call.1} parent=1 // pred_fallthru
      _
    %v32 = vlaneseq
    %v33 = vand.u32 %v32, 127
    %v34 = vld [vmem:[%s0] sm:$0xff]
    %v35 = vld [vmem:[%s0 + $0x8] sm:$0xff]
    %36 = vset.pattern.permute.xlu0 0
    %37 = vperm.xlu0 %36, %v34
    %v38 = vpop.permute.xlu0 %37
    %39 = vset.pattern.permute.xlu0 0
    %40 = vperm.xlu0 %39, %v35
    %v41 = vpop.permute.xlu0 %40
    %vm42 = vcmp.eq.s32.totalorder %v38, %v33
    %vm43 = vcmp.eq.s32.totalorder %v41, %v33
    %v44 = vsel %vm42, 1, 0
    %v45 = vsel %vm43, 1, 0
    %v46 = vcvt.s32.f32 %v44
    %v47 = vcvt.s32.f32 %v45
    %v48 = vld [vmem:[%s2] sm:$0xff]
    %v49 = vld [vmem:[%s1] sm:$0xff]
    %v50 = vld [vmem:[%s1 + $0x8] sm:$0xff]
    %v51 = vld [vmem:[#allocation2] sm:$0xff]
    %v52 = vld [vmem:[#allocation2 + $0x8] sm:$0xff]
    %v53 = vld [vmem:[#allocation2 + $0x10] sm:$0xff]
    %v54 = vld [vmem:[#allocation2 + $0x18] sm:$0xff]
    %vm55 = vcmask 261120
    %v57 = vsel %vm55, %v49, 0
    %v60 = vsel %vm55, %v50, 0
    %62 = vmatprep.subr.mxu0 0.0
    %63 = vmatpush1.msra.mxu0 %v51
    %64 = vmatprep.subr.mxu0 0.0
    %65 = vmatpush1.msra.mxu0 %v52
    %66 = vmatprep.subr.mxu0 0.0
    %67 = vmatpush1.msra.mxu0 %v53
    %68 = vmatprep.subr.mxu0 0.0
    %69 = vmatpush1.msra.mxu0 %v54
    %70 = vmatprep.subr.mxu0 0.0
    %71 = vmatpush1.msra.mxu0 0.0
    %72 = vmatprep.subr.mxu0 0.0
    %73 = vmatpush1.msra.mxu0 0.0
    %74 = vmatprep.subr.mxu0 0.0
    %75 = vmatpush1.msra.mxu0 0.0
    %76 = vmatprep.subr.mxu0 0.0
    %77 = vmatpush1.msra.mxu0 0.0
    %78 = vmatprep.subr.mxu0 0.0
    %79 = vmatpush1.msra.mxu0 0.0
    %80 = vmatprep.subr.mxu0 0.0
    %81 = vmatpush1.msra.mxu0 0.0
    %82 = vmatprep.subr.mxu0 0.0
    %83 = vmatpush1.msra.mxu0 0.0
    %84 = vmatprep.subr.mxu0 0.0
    %85 = vmatpush1.msra.mxu0 0.0
    %86 = vmatprep.subr.mxu0 0.0
    %87 = vmatpush1.msra.mxu0 0.0
    %88 = vmatprep.subr.mxu0 0.0
    %89 = vmatpush1.msra.mxu0 0.0
    %90 = vmatprep.subr.mxu0 0.0
    %91 = vmatpush1.msra.mxu0 0.0
    %92 = vmatprep.subr.mxu0 0.0
    %93 = vmatpush1.msra.mxu0 0.0
    %94 = vmatprep.subr.mxu0 0.0
    %95 = vmatpush1.msra.mxu0 0.0
    %96 = vmatprep.subr.mxu0 0.0
    %97 = vmatpush1.msra.mxu0 0.0
    %98 = vmatprep.subr.mxu0 0.0
    %99 = vmatpush1.msra.mxu0 0.0
    %100 = vmatprep.subr.mxu0 0.0
    %101 = vmatpush1.msra.mxu0 0.0
    %102 = vmatprep.subr.mxu0 0.0
    %103 = vmatpush1.msra.mxu0 0.0
    %104 = vmatprep.subr.mxu0 0.0
    %105 = vmatpush1.msra.mxu0 0.0
    %106 = vmatprep.subr.mxu0 0.0
    %107 = vmatpush1.msra.mxu0 0.0
    %108 = vmatprep.subr.mxu0 0.0
    %109 = vmatpush1.msra.mxu0 0.0
    %110 = vmatprep.subr.mxu0 0.0
    %111 = vmatpush1.msra.mxu0 0.0
    %112 = vmatprep.subr.mxu0 0.0
    %113 = vmatpush1.msra.mxu0 0.0
    %114 = vmatprep.subr.mxu0 0.0
    %115 = vmatpush1.msra.mxu0 0.0
    %116 = vmatprep.subr.mxu0 0.0
    %117 = vmatpush1.msra.mxu0 0.0
    %118 = vmatprep.subr.mxu0 0.0
    %119 = vmatpush1.msra.mxu0 0.0
    %120 = vmatprep.subr.mxu0 0.0
    %121 = vmatpush1.msra.mxu0 0.0
    %122 = vmatprep.subr.mxu0 0.0
    %123 = vmatpush1.msra.mxu0 0.0
    %124 = vmatprep.subr.mxu0 0.0
    %125 = vmatpush1.msra.mxu0 0.0
    %126 = vmatprep.mubr.f32.mxu0 0.0
    %127 = vmatmul.mubr.f32.gmra.mrb[0].mxu0 %v57
    %v128 = vpop.f32.mrb[0].mxu0
    %v129 = vadd.f32 0.0, %v128
    %v130 = vpop.f32.mrb[0].mxu0
    %131 = vmatprep.mubr.f32.mxu0 0.0
    %132 = vmatmul.mubr.f32.gmra.mrb[0].mxu0 %v60
    %v133 = vpop.f32.mrb[0].mxu0
    %v134 = vadd.f32 0.0, %v133
    %v135 = vpop.f32.mrb[0].mxu0
    %136 = vdwg.mxu0
    %vm137 = vcmask 64512
    %v139 = vsel %vm137, %v46, 0
    %v142 = vsel %vm137, %v47, 0
    %144 = vmatprep.subr.mxu0 0.0
    %145 = vmatpush1.msra.mxu0 %v48
    %146 = vmatprep.subr.mxu0 0.0
    %147 = vmatpush1.msra.mxu0 0.0
    %148 = vmatprep.subr.mxu0 0.0
    %149 = vmatpush1.msra.mxu0 0.0
    %150 = vmatprep.subr.mxu0 0.0
    %151 = vmatpush1.msra.mxu0 0.0
    %152 = vmatprep.subr.mxu0 0.0
    %153 = vmatpush1.msra.mxu0 0.0
    %154 = vmatprep.subr.mxu0 0.0
    %155 = vmatpush1.msra.mxu0 0.0
    %156 = vmatprep.subr.mxu0 0.0
    %157 = vmatpush1.msra.mxu0 0.0
    %158 = vmatprep.subr.mxu0 0.0
    %159 = vmatpush1.msra.mxu0 0.0
    %160 = vmatprep.subr.mxu0 0.0
    %161 = vmatpush1.msra.mxu0 0.0
    %162 = vmatprep.subr.mxu0 0.0
    %163 = vmatpush1.msra.mxu0 0.0
    %164 = vmatprep.subr.mxu0 0.0
    %165 = vmatpush1.msra.mxu0 0.0
    %166 = vmatprep.subr.mxu0 0.0
    %167 = vmatpush1.msra.mxu0 0.0
    %168 = vmatprep.subr.mxu0 0.0
    %169 = vmatpush1.msra.mxu0 0.0
    %170 = vmatprep.subr.mxu0 0.0
    %171 = vmatpush1.msra.mxu0 0.0
    %172 = vmatprep.subr.mxu0 0.0
    %173 = vmatpush1.msra.mxu0 0.0
    %174 = vmatprep.subr.mxu0 0.0
    %175 = vmatpush1.msra.mxu0 0.0
    %176 = vmatprep.subr.mxu0 0.0
    %177 = vmatpush1.msra.mxu0 0.0
    %178 = vmatprep.subr.mxu0 0.0
    %179 = vmatpush1.msra.mxu0 0.0
    %180 = vmatprep.subr.mxu0 0.0
    %181 = vmatpush1.msra.mxu0 0.0
    %182 = vmatprep.subr.mxu0 0.0
    %183 = vmatpush1.msra.mxu0 0.0
    %184 = vmatprep.subr.mxu0 0.0
    %185 = vmatpush1.msra.mxu0 0.0
    %186 = vmatprep.subr.mxu0 0.0
    %187 = vmatpush1.msra.mxu0 0.0
    %188 = vmatprep.subr.mxu0 0.0
    %189 = vmatpush1.msra.mxu0 0.0
    %190 = vmatprep.subr.mxu0 0.0
    %191 = vmatpush1.msra.mxu0 0.0
    %192 = vmatprep.subr.mxu0 0.0
    %193 = vmatpush1.msra.mxu0 0.0
    %194 = vmatprep.subr.mxu0 0.0
    %195 = vmatpush1.msra.mxu0 0.0
    %196 = vmatprep.subr.mxu0 0.0
    %197 = vmatpush1.msra.mxu0 0.0
    %198 = vmatprep.subr.mxu0 0.0
    %199 = vmatpush1.msra.mxu0 0.0
    %200 = vmatprep.subr.mxu0 0.0
    %201 = vmatpush1.msra.mxu0 0.0
    %202 = vmatprep.subr.mxu0 0.0
    %203 = vmatpush1.msra.mxu0 0.0
    %204 = vmatprep.subr.mxu0 0.0
    %205 = vmatpush1.msra.mxu0 0.0
    %206 = vmatprep.subr.mxu0 0.0
    %207 = vmatpush1.msra.mxu0 0.0
    %208 = vmatprep.mubr.f32.mxu0 0.0
    %209 = vmatmul.mubr.f32.gmra.mrb[0].mxu0 %v139
    %v210 = vpop.f32.mrb[0].mxu0
    %v211 = vadd.f32 %v129, %v210
    %v212 = vpop.f32.mrb[0].mxu0
    %213 = vmatprep.mubr.f32.mxu0 0.0
    %214 = vmatmul.mubr.f32.gmra.mrb[0].mxu0 %v142
    %v215 = vpop.f32.mrb[0].mxu0
    %v216 = vadd.f32 %v134, %v215
    %v217 = vpop.f32.mrb[0].mxu0
    %218 = vdwg.mxu0
    %v219 = vmax.f32 %v211, 0.0
    %v220 = vmax.f32 %v216, 0.0
    %221 = vst.msk [vmem:[#allocation5] sm:$0xff] %vm55, %v219
    %222 = vst.msk [vmem:[#allocation5 + $0x8] sm:$0xff] %vm55, %v220
    // Predicated region
    $region22: #{tpu_custom_call.1} parent=1 // pred_check
      _
    $region23: #{tpu_custom_call.1} parent=1 // pred_check_branch
      %224 = sbr.rel (0) target = $region25
    $region24: #{tpu_custom_call.1} parent=1 // pred_region
      %s226 = ssub.s32 256, 256
      %227 = vsyncadd [#allocation4], %s226
      %s228 = sshll.u32 [#allocation5], 4
      %s229 = int_to_ptr.vmem [resolvable:$true] %s228
      %234 = dma.vmem_to_hbm [thread:$0]  %s229, 256, %s4, [#allocation4], 128, 128, 8
    $region25: #{tpu_custom_call.1} parent=1 // pred_fallthru
      _
    // Predicated region
    $region26: #{tpu_custom_call.1} parent=1 // pred_check
      _
    $region27: #{tpu_custom_call.1} parent=1 // pred_check_branch
      %236 = sbr.rel (0) target = $region29
    $region28: #{tpu_custom_call.1} parent=1 // pred_region
      %237 = dma.done [#allocation4], 256
    $region29: #{tpu_custom_call.1} parent=1 // pred_fallthru
      _
    %238 = vsyncpa [#allocation3], 1
    %239 = vsyncpa [#allocation4], 1

</llo_original>
